<compile_context>
chip_gen: v7x
topology: tpu7x:2x2x1
jax: 0.10.0
libtpu: 0.0.40
codegen_flags: <defaults>
</compile_context>

<pallas_src>
import jax
import jax.numpy as jnp
from jax import lax
from jax.experimental import pallas as pl
from jax.experimental.pallas import tpu as pltpu


def _vmem_capacity_bytes():
    """Physical VMEM per core; conservative (v7x, 64 MiB) fallback if query fails."""
    try:
        return int(pltpu.get_tpu_info().vmem_capacity_bytes)
    except Exception:
        return 64 * 1024 * 1024


def text_sentiment_forward(text_ids, emb_table, fc_w, fc_b, *,
                           bags_per_step=8, nbuf=8, force_hbm_path=False):
    """EmbeddingBag(mode='mean', offsets=[0]) -> Linear, fused in one Pallas kernel.

    text_ids : int (seq,) single bag (== the PyTorch forward) or (batch, seq) bags.
    emb_table: (vocab, embed_dim)        bf16 recommended.
    fc_w     : (embed_dim, num_class)    transpose of PyTorch fc.weight, bf16 ok.
    fc_b     : (num_class,) float32.
    returns  : float32 (batch, num_class)   (batch=1 for 1-D input).
    """
    ids = jnp.asarray(text_ids, jnp.int32)
    if ids.ndim == 1:
        ids = ids[None, :]
    batch, seq_len = ids.shape
    vocab, embed_dim = emb_table.shape
    num_class = fc_w.shape[1]
    assert seq_len >= 1 and batch >= 1

    # Untrusted ids: clamp so the row gather / row DMA can never read OOB.
    ids = jnp.clip(ids, 0, vocab - 1)

    # ---- tile the batch: TB bags per grid step.  TB=8 keeps the output block
    # second-minor a multiple of 8 (sublane-dense store, (8,128)-rule safe).
    TB = int(bags_per_step)
    padded_batch = -(-batch // TB) * TB
    if padded_batch != batch:
        ids = jnp.pad(ids, ((0, padded_batch - batch), (0, 0)))
    grid_len = padded_batch // TB   # v7x: batches > TB give grid >= 2 -> both TCs

    # Flat 1-D id vector for scalar prefetch (1-D SMEM pads far tighter than 2-D).
    ids_flat = ids.reshape(-1)

    bias = jnp.asarray(fc_b, jnp.float32).reshape(1, num_class)
    inv_seq = 1.0 / float(seq_len)   # TODO(synk): real EmbeddingBag offsets would
                                     # need per-bag lengths; forward() uses offsets=[0].
    unroll = True if seq_len <= 16 else 8

    vmem_cap = _vmem_capacity_bytes()
    table_f32_bytes = vocab * embed_dim * 4
    use_vmem_table = (not force_hbm_path) and (table_f32_bytes <= vmem_cap // 4)

    out_shape = jax.ShapeDtypeStruct((padded_batch, num_class), jnp.float32)
    out_spec = pl.BlockSpec((TB, num_class), lambda t, _ids: (t, 0))
    w_spec = pl.BlockSpec((embed_dim, num_class), lambda t, _ids: (0, 0))
    b_spec = pl.BlockSpec((1, num_class), lambda t, _ids: (0, 0))

    def epilogue(rows, w_ref, b_ref, out_ref):
        # Bag means -> bf16 -> MXU in its native bf16 x bf16 -> f32 mode.
        mean = jnp.concatenate(rows, axis=0) * inv_seq              # (TB, E) f32
        out_ref[...] = (
            jnp.dot(mean.astype(w_ref.dtype), w_ref[...],
                    preferred_element_type=jnp.float32)
            + b_ref[...]
        )

    if use_vmem_table:
        # ------------- fast path: whole embedding table resident in VMEM -------------
        emb_vmem = emb_table.astype(jnp.float32)

        def kernel(ids_ref, emb_ref, w_ref, b_ref, out_ref):
            t = pl.program_id(0)
            base = t * (TB * seq_len)
            rows = []
            for b in range(TB):                                   # static, TB == 8
                row_base = base + b * seq_len

                def body(j, acc, row_base=row_base):
                    idx = ids_ref[row_base + j]                   # scalar from SMEM
                    return acc + emb_ref[pl.ds(idx, 1), :]        # (1, E) dynamic row
                rows.append(lax.fori_loop(
                    0, seq_len, body,
                    jnp.zeros((1, embed_dim), jnp.float32), unroll=unroll))
            epilogue(rows, w_ref, b_ref, out_ref)

        out = pl.pallas_call(
            kernel,
            out_shape=out_shape,
            grid_spec=pltpu.PrefetchScalarGridSpec(
                num_scalar_prefetch=1,                            # ids -> SMEM
                grid=(grid_len,),
                in_specs=[
                    pl.BlockSpec((vocab, embed_dim), lambda t, _ids: (0, 0)),  # table
                    w_spec,
                    b_spec,
                ],
                out_specs=out_spec,
            ),
            compiler_params=pltpu.CompilerParams(
                dimension_semantics=("parallel",),
                vmem_limit_bytes=int(min(vmem_cap * 3 // 4,
                                         max(32 << 20,
                                             2 * table_f32_bytes + (8 << 20)))),
            ),
        )(ids_flat, emb_vmem, fc_w, bias)

    else:
        # ------------- large-table path: table stays in HBM, ring of row DMAs -------------
        ntok = TB * seq_len
        NBUF = max(1, min(int(nbuf), ntok))

        def kernel(ids_ref, emb_hbm, w_ref, b_ref, out_ref, row_buf, sems):
            t = pl.program_id(0)
            base = t * ntok

            def row_copy(idx, slot):
                # One helper builds BOTH start and wait descriptors so the
                # .wait() byte accounting always matches the started transfer.
                return pltpu.make_async_copy(
                    emb_hbm.at[pl.ds(idx, 1)],      # (1, E) row in HBM
                    row_buf.at[slot],               # (1, E) VMEM ring slot
                    sems.at[slot])

            # Prime NBUF outstanding row fetches (flat token order across bags).
            for s in range(NBUF):                                 # static
                row_copy(ids_ref[base + s], s).start()

            rows = []
            for b in range(TB):                                   # static bag loop
                def body(j, acc, b=b):
                    tok = b * seq_len + j                         # flat token index
                    slot = tok % NBUF
                    # Read the NEXT fetch's id from SMEM *before* the wait.
                    nxt = tok + NBUF
                    has_next = nxt < ntok
                    nxt_idx = ids_ref[base + jnp.where(has_next, nxt, tok)]
                    row_copy(0, slot).wait()
                    acc = acc + row_buf[slot].astype(jnp.float32)  # (1, E)

                    @pl.when(has_next)
                    def _():                                      # refill drained slot
                        row_copy(nxt_idx, slot).start()
                    return acc

                rows.append(lax.fori_loop(
                    0, seq_len, body,
                    jnp.zeros((1, embed_dim), jnp.float32), unroll=unroll))
            epilogue(rows, w_ref, b_ref, out_ref)

        out = pl.pallas_call(
            kernel,
            out_shape=out_shape,
            grid_spec=pltpu.PrefetchScalarGridSpec(
                num_scalar_prefetch=1,                            # ids -> SMEM
                grid=(grid_len,),
                in_specs=[
                    pl.BlockSpec(memory_space=pl.ANY),            # table stays in HBM
                    w_spec,
                    b_spec,
                ],
                out_specs=out_spec,
                scratch_shapes=[
                    pltpu.VMEM((NBUF, 1, embed_dim), emb_table.dtype),  # row ring
                    pltpu.SemaphoreType.DMA((NBUF,)),
                ],
            ),
            compiler_params=pltpu.CompilerParams(
                dimension_semantics=("parallel",),
            ),
        )(ids_flat, emb_table, fc_w, bias)

    return out[:batch]


if __name__ == "__main__":
    # Small deterministic config consistent with TextSentiment(vocab, embed_dim, num_class).
    vocab_size, embed_dim, num_class = 64, 32, 8
    batch, seq_len = 16, 8          # batch = 2*TB -> grid of 2 (megacore-shardable on v7x)

    key = jax.random.PRNGKey(0)
    k_emb, k_w, k_idx = jax.random.split(key, 3)

    initrange = 0.5
    emb_table = jax.random.uniform(
        k_emb, (vocab_size, embed_dim), jnp.float32, -initrange, initrange
    ).astype(jnp.bfloat16)
    # PyTorch fc.weight is (num_class, embed_dim); we store its transpose.
    fc_w = jax.random.uniform(
        k_w, (embed_dim, num_class), jnp.float32, -initrange, initrange
    ).astype(jnp.bfloat16)
    fc_b = jnp.zeros((num_class,), jnp.float32)

    text_batch = jax.random.randint(
        k_idx, (batch, seq_len), 0, vocab_size, dtype=jnp.int32)

    # Pure-JAX reference (same bf16-stored weights; the bag mean is rounded to
    # bf16 exactly as the kernel feeds it to the MXU).
    emb_f32 = emb_table.astype(jnp.float32)
    w_f32 = fc_w.astype(jnp.float32)
    mean_ref = jnp.sum(emb_f32[text_batch], axis=1) * (1.0 / seq_len)
    ref = mean_ref.astype(jnp.bfloat16).astype(jnp.float32) @ w_f32 + fc_b[None, :]

    # 1) VMEM-resident-table fast path (the table is tiny here).
    out = jax.block_until_ready(
        text_sentiment_forward(text_batch, emb_table, fc_w, fc_b))
    assert out.shape == (batch, num_class)
    assert jnp.allclose(out, ref, atol=1e-3, rtol=1e-3)

    # 2) HBM row-DMA gather path (what large vocabularies take), forced for coverage.
    out_hbm = jax.block_until_ready(
        text_sentiment_forward(text_batch, emb_table, fc_w, fc_b, force_hbm_path=True))
    assert out_hbm.shape == (batch, num_class)
    assert jnp.allclose(out_hbm, ref, atol=1e-3, rtol=1e-3)

    # 3) Single-bag path: exactly the PyTorch forward (1-D text, offsets=[0]).
    out1 = jax.block_until_ready(
        text_sentiment_forward(text_batch[0], emb_table, fc_w, fc_b))
    assert out1.shape == (1, num_class)
    assert jnp.allclose(out1, ref[0:1], atol=1e-3, rtol=1e-3)

    print("KERNEL_OK")
</pallas_src>

<mosaic_0001>
module attributes {stable_mosaic.version = 11 : i64} {
  func.func @kernel(%arg0: i32, %arg1: memref<128xi32, #tpu.memory_space<smem>>, %arg2: memref<64x32xf32, #tpu.memory_space<vmem>>, %arg3: memref<32x8xbf16, #tpu.memory_space<vmem>>, %arg4: memref<1x8xf32, #tpu.memory_space<vmem>>, %arg5: memref<8x8xf32, #tpu.memory_space<vmem>>) attributes {dimension_semantics = [#tpu.dimension_semantics<parallel>], iteration_bounds = array<i64: 2>, scalar_prefetch = 1 : i64, scratch_operands = 0 : i64, tpu.core_type = #tpu.core_type<tc>, window_params = [{pipeline_mode = #tpu.pipeline_mode<synchronous>, transform_indices = @transform_0, window_bounds = array<i64: 64, 32>}, {pipeline_mode = #tpu.pipeline_mode<synchronous>, transform_indices = @transform_1, window_bounds = array<i64: 32, 8>}, {pipeline_mode = #tpu.pipeline_mode<synchronous>, transform_indices = @transform_2, window_bounds = array<i64: 1, 8>}, {transform_indices = @transform_3, window_bounds = array<i64: 8, 8>}]} {
    %c64_i32 = arith.constant 64 : i32
    %0 = arith.muli %arg0, %c64_i32 : i32
    %c0_i32 = arith.constant 0 : i32
    %1 = arith.addi %0, %c0_i32 : i32
    %cst = arith.constant 0.000000e+00 : f32
    %2 = vector.broadcast %cst : f32 to vector<1x32xf32>
    %c0_i32_0 = arith.constant 0 : i32
    %3 = arith.addi %1, %c0_i32_0 : i32
    %4 = arith.index_cast %3 : i32 to index
    %5 = memref.load %arg1[%4] : memref<128xi32, #tpu.memory_space<smem>>
    %6 = arith.index_cast %5 : i32 to index
    %c0 = arith.constant 0 : index
    %7 = vector.load %arg2[%6, %c0] : memref<64x32xf32, #tpu.memory_space<vmem>>, vector<1x32xf32>
    %8 = arith.addf %2, %7 : vector<1x32xf32>
    %c1_i32 = arith.constant 1 : i32
    %9 = arith.addi %1, %c1_i32 : i32
    %10 = arith.index_cast %9 : i32 to index
    %11 = memref.load %arg1[%10] : memref<128xi32, #tpu.memory_space<smem>>
    %12 = arith.index_cast %11 : i32 to index
    %c0_1 = arith.constant 0 : index
    %13 = vector.load %arg2[%12, %c0_1] : memref<64x32xf32, #tpu.memory_space<vmem>>, vector<1x32xf32>
    %14 = arith.addf %8, %13 : vector<1x32xf32>
    %c2_i32 = arith.constant 2 : i32
    %15 = arith.addi %1, %c2_i32 : i32
    %16 = arith.index_cast %15 : i32 to index
    %17 = memref.load %arg1[%16] : memref<128xi32, #tpu.memory_space<smem>>
    %18 = arith.index_cast %17 : i32 to index
    %c0_2 = arith.constant 0 : index
    %19 = vector.load %arg2[%18, %c0_2] : memref<64x32xf32, #tpu.memory_space<vmem>>, vector<1x32xf32>
    %20 = arith.addf %14, %19 : vector<1x32xf32>
    %c3_i32 = arith.constant 3 : i32
    %21 = arith.addi %1, %c3_i32 : i32
    %22 = arith.index_cast %21 : i32 to index
    %23 = memref.load %arg1[%22] : memref<128xi32, #tpu.memory_space<smem>>
    %24 = arith.index_cast %23 : i32 to index
    %c0_3 = arith.constant 0 : index
    %25 = vector.load %arg2[%24, %c0_3] : memref<64x32xf32, #tpu.memory_space<vmem>>, vector<1x32xf32>
    %26 = arith.addf %20, %25 : vector<1x32xf32>
    %c4_i32 = arith.constant 4 : i32
    %27 = arith.addi %1, %c4_i32 : i32
    %28 = arith.index_cast %27 : i32 to index
    %29 = memref.load %arg1[%28] : memref<128xi32, #tpu.memory_space<smem>>
    %30 = arith.index_cast %29 : i32 to index
    %c0_4 = arith.constant 0 : index
    %31 = vector.load %arg2[%30, %c0_4] : memref<64x32xf32, #tpu.memory_space<vmem>>, vector<1x32xf32>
    %32 = arith.addf %26, %31 : vector<1x32xf32>
    %c5_i32 = arith.constant 5 : i32
    %33 = arith.addi %1, %c5_i32 : i32
    %34 = arith.index_cast %33 : i32 to index
    %35 = memref.load %arg1[%34] : memref<128xi32, #tpu.memory_space<smem>>
    %36 = arith.index_cast %35 : i32 to index
    %c0_5 = arith.constant 0 : index
    %37 = vector.load %arg2[%36, %c0_5] : memref<64x32xf32, #tpu.memory_space<vmem>>, vector<1x32xf32>
    %38 = arith.addf %32, %37 : vector<1x32xf32>
    %c6_i32 = arith.constant 6 : i32
    %39 = arith.addi %1, %c6_i32 : i32
    %40 = arith.index_cast %39 : i32 to index
    %41 = memref.load %arg1[%40] : memref<128xi32, #tpu.memory_space<smem>>
    %42 = arith.index_cast %41 : i32 to index
    %c0_6 = arith.constant 0 : index
    %43 = vector.load %arg2[%42, %c0_6] : memref<64x32xf32, #tpu.memory_space<vmem>>, vector<1x32xf32>
    %44 = arith.addf %38, %43 : vector<1x32xf32>
    %c7_i32 = arith.constant 7 : i32
    %45 = arith.addi %1, %c7_i32 : i32
    %46 = arith.index_cast %45 : i32 to index
    %47 = memref.load %arg1[%46] : memref<128xi32, #tpu.memory_space<smem>>
    %48 = arith.index_cast %47 : i32 to index
    %c0_7 = arith.constant 0 : index
    %49 = vector.load %arg2[%48, %c0_7] : memref<64x32xf32, #tpu.memory_space<vmem>>, vector<1x32xf32>
    %50 = arith.addf %44, %49 : vector<1x32xf32>
    %c8_i32 = arith.constant 8 : i32
    %c8_i32_8 = arith.constant 8 : i32
    %51 = arith.addi %0, %c8_i32_8 : i32
    %cst_9 = arith.constant 0.000000e+00 : f32
    %52 = vector.broadcast %cst_9 : f32 to vector<1x32xf32>
    %c0_i32_10 = arith.constant 0 : i32
    %53 = arith.addi %51, %c0_i32_10 : i32
    %54 = arith.index_cast %53 : i32 to index
    %55 = memref.load %arg1[%54] : memref<128xi32, #tpu.memory_space<smem>>
    %56 = arith.index_cast %55 : i32 to index
    %c0_11 = arith.constant 0 : index
    %57 = vector.load %arg2[%56, %c0_11] : memref<64x32xf32, #tpu.memory_space<vmem>>, vector<1x32xf32>
    %58 = arith.addf %52, %57 : vector<1x32xf32>
    %c1_i32_12 = arith.constant 1 : i32
    %59 = arith.addi %51, %c1_i32_12 : i32
    %60 = arith.index_cast %59 : i32 to index
    %61 = memref.load %arg1[%60] : memref<128xi32, #tpu.memory_space<smem>>
    %62 = arith.index_cast %61 : i32 to index
    %c0_13 = arith.constant 0 : index
    %63 = vector.load %arg2[%62, %c0_13] : memref<64x32xf32, #tpu.memory_space<vmem>>, vector<1x32xf32>
    %64 = arith.addf %58, %63 : vector<1x32xf32>
    %c2_i32_14 = arith.constant 2 : i32
    %65 = arith.addi %51, %c2_i32_14 : i32
    %66 = arith.index_cast %65 : i32 to index
    %67 = memref.load %arg1[%66] : memref<128xi32, #tpu.memory_space<smem>>
    %68 = arith.index_cast %67 : i32 to index
    %c0_15 = arith.constant 0 : index
    %69 = vector.load %arg2[%68, %c0_15] : memref<64x32xf32, #tpu.memory_space<vmem>>, vector<1x32xf32>
    %70 = arith.addf %64, %69 : vector<1x32xf32>
    %c3_i32_16 = arith.constant 3 : i32
    %71 = arith.addi %51, %c3_i32_16 : i32
    %72 = arith.index_cast %71 : i32 to index
    %73 = memref.load %arg1[%72] : memref<128xi32, #tpu.memory_space<smem>>
    %74 = arith.index_cast %73 : i32 to index
    %c0_17 = arith.constant 0 : index
    %75 = vector.load %arg2[%74, %c0_17] : memref<64x32xf32, #tpu.memory_space<vmem>>, vector<1x32xf32>
    %76 = arith.addf %70, %75 : vector<1x32xf32>
    %c4_i32_18 = arith.constant 4 : i32
    %77 = arith.addi %51, %c4_i32_18 : i32
    %78 = arith.index_cast %77 : i32 to index
    %79 = memref.load %arg1[%78] : memref<128xi32, #tpu.memory_space<smem>>
    %80 = arith.index_cast %79 : i32 to index
    %c0_19 = arith.constant 0 : index
    %81 = vector.load %arg2[%80, %c0_19] : memref<64x32xf32, #tpu.memory_space<vmem>>, vector<1x32xf32>
    %82 = arith.addf %76, %81 : vector<1x32xf32>
    %c5_i32_20 = arith.constant 5 : i32
    %83 = arith.addi %51, %c5_i32_20 : i32
    %84 = arith.index_cast %83 : i32 to index
    %85 = memref.load %arg1[%84] : memref<128xi32, #tpu.memory_space<smem>>
    %86 = arith.index_cast %85 : i32 to index
    %c0_21 = arith.constant 0 : index
    %87 = vector.load %arg2[%86, %c0_21] : memref<64x32xf32, #tpu.memory_space<vmem>>, vector<1x32xf32>
    %88 = arith.addf %82, %87 : vector<1x32xf32>
    %c6_i32_22 = arith.constant 6 : i32
    %89 = arith.addi %51, %c6_i32_22 : i32
    %90 = arith.index_cast %89 : i32 to index
    %91 = memref.load %arg1[%90] : memref<128xi32, #tpu.memory_space<smem>>
    %92 = arith.index_cast %91 : i32 to index
    %c0_23 = arith.constant 0 : index
    %93 = vector.load %arg2[%92, %c0_23] : memref<64x32xf32, #tpu.memory_space<vmem>>, vector<1x32xf32>
    %94 = arith.addf %88, %93 : vector<1x32xf32>
    %c7_i32_24 = arith.constant 7 : i32
    %95 = arith.addi %51, %c7_i32_24 : i32
    %96 = arith.index_cast %95 : i32 to index
    %97 = memref.load %arg1[%96] : memref<128xi32, #tpu.memory_space<smem>>
    %98 = arith.index_cast %97 : i32 to index
    %c0_25 = arith.constant 0 : index
    %99 = vector.load %arg2[%98, %c0_25] : memref<64x32xf32, #tpu.memory_space<vmem>>, vector<1x32xf32>
    %100 = arith.addf %94, %99 : vector<1x32xf32>
    %c8_i32_26 = arith.constant 8 : i32
    %c16_i32 = arith.constant 16 : i32
    %101 = arith.addi %0, %c16_i32 : i32
    %cst_27 = arith.constant 0.000000e+00 : f32
    %102 = vector.broadcast %cst_27 : f32 to vector<1x32xf32>
    %c0_i32_28 = arith.constant 0 : i32
    %103 = arith.addi %101, %c0_i32_28 : i32
    %104 = arith.index_cast %103 : i32 to index
    %105 = memref.load %arg1[%104] : memref<128xi32, #tpu.memory_space<smem>>
    %106 = arith.index_cast %105 : i32 to index
    %c0_29 = arith.constant 0 : index
    %107 = vector.load %arg2[%106, %c0_29] : memref<64x32xf32, #tpu.memory_space<vmem>>, vector<1x32xf32>
    %108 = arith.addf %102, %107 : vector<1x32xf32>
    %c1_i32_30 = arith.constant 1 : i32
    %109 = arith.addi %101, %c1_i32_30 : i32
    %110 = arith.index_cast %109 : i32 to index
    %111 = memref.load %arg1[%110] : memref<128xi32, #tpu.memory_space<smem>>
    %112 = arith.index_cast %111 : i32 to index
    %c0_31 = arith.constant 0 : index
    %113 = vector.load %arg2[%112, %c0_31] : memref<64x32xf32, #tpu.memory_space<vmem>>, vector<1x32xf32>
    %114 = arith.addf %108, %113 : vector<1x32xf32>
    %c2_i32_32 = arith.constant 2 : i32
    %115 = arith.addi %101, %c2_i32_32 : i32
    %116 = arith.index_cast %115 : i32 to index
    %117 = memref.load %arg1[%116] : memref<128xi32, #tpu.memory_space<smem>>
    %118 = arith.index_cast %117 : i32 to index
    %c0_33 = arith.constant 0 : index
    %119 = vector.load %arg2[%118, %c0_33] : memref<64x32xf32, #tpu.memory_space<vmem>>, vector<1x32xf32>
    %120 = arith.addf %114, %119 : vector<1x32xf32>
    %c3_i32_34 = arith.constant 3 : i32
    %121 = arith.addi %101, %c3_i32_34 : i32
    %122 = arith.index_cast %121 : i32 to index
    %123 = memref.load %arg1[%122] : memref<128xi32, #tpu.memory_space<smem>>
    %124 = arith.index_cast %123 : i32 to index
    %c0_35 = arith.constant 0 : index
    %125 = vector.load %arg2[%124, %c0_35] : memref<64x32xf32, #tpu.memory_space<vmem>>, vector<1x32xf32>
    %126 = arith.addf %120, %125 : vector<1x32xf32>
    %c4_i32_36 = arith.constant 4 : i32
    %127 = arith.addi %101, %c4_i32_36 : i32
    %128 = arith.index_cast %127 : i32 to index
    %129 = memref.load %arg1[%128] : memref<128xi32, #tpu.memory_space<smem>>
    %130 = arith.index_cast %129 : i32 to index
    %c0_37 = arith.constant 0 : index
    %131 = vector.load %arg2[%130, %c0_37] : memref<64x32xf32, #tpu.memory_space<vmem>>, vector<1x32xf32>
    %132 = arith.addf %126, %131 : vector<1x32xf32>
    %c5_i32_38 = arith.constant 5 : i32
    %133 = arith.addi %101, %c5_i32_38 : i32
    %134 = arith.index_cast %133 : i32 to index
    %135 = memref.load %arg1[%134] : memref<128xi32, #tpu.memory_space<smem>>
    %136 = arith.index_cast %135 : i32 to index
    %c0_39 = arith.constant 0 : index
    %137 = vector.load %arg2[%136, %c0_39] : memref<64x32xf32, #tpu.memory_space<vmem>>, vector<1x32xf32>
    %138 = arith.addf %132, %137 : vector<1x32xf32>
    %c6_i32_40 = arith.constant 6 : i32
    %139 = arith.addi %101, %c6_i32_40 : i32
    %140 = arith.index_cast %139 : i32 to index
    %141 = memref.load %arg1[%140] : memref<128xi32, #tpu.memory_space<smem>>
    %142 = arith.index_cast %141 : i32 to index
    %c0_41 = arith.constant 0 : index
    %143 = vector.load %arg2[%142, %c0_41] : memref<64x32xf32, #tpu.memory_space<vmem>>, vector<1x32xf32>
    %144 = arith.addf %138, %143 : vector<1x32xf32>
    %c7_i32_42 = arith.constant 7 : i32
    %145 = arith.addi %101, %c7_i32_42 : i32
    %146 = arith.index_cast %145 : i32 to index
    %147 = memref.load %arg1[%146] : memref<128xi32, #tpu.memory_space<smem>>
    %148 = arith.index_cast %147 : i32 to index
    %c0_43 = arith.constant 0 : index
    %149 = vector.load %arg2[%148, %c0_43] : memref<64x32xf32, #tpu.memory_space<vmem>>, vector<1x32xf32>
    %150 = arith.addf %144, %149 : vector<1x32xf32>
    %c8_i32_44 = arith.constant 8 : i32
    %c24_i32 = arith.constant 24 : i32
    %151 = arith.addi %0, %c24_i32 : i32
    %cst_45 = arith.constant 0.000000e+00 : f32
    %152 = vector.broadcast %cst_45 : f32 to vector<1x32xf32>
    %c0_i32_46 = arith.constant 0 : i32
    %153 = arith.addi %151, %c0_i32_46 : i32
    %154 = arith.index_cast %153 : i32 to index
    %155 = memref.load %arg1[%154] : memref<128xi32, #tpu.memory_space<smem>>
    %156 = arith.index_cast %155 : i32 to index
    %c0_47 = arith.constant 0 : index
    %157 = vector.load %arg2[%156, %c0_47] : memref<64x32xf32, #tpu.memory_space<vmem>>, vector<1x32xf32>
    %158 = arith.addf %152, %157 : vector<1x32xf32>
    %c1_i32_48 = arith.constant 1 : i32
    %159 = arith.addi %151, %c1_i32_48 : i32
    %160 = arith.index_cast %159 : i32 to index
    %161 = memref.load %arg1[%160] : memref<128xi32, #tpu.memory_space<smem>>
    %162 = arith.index_cast %161 : i32 to index
    %c0_49 = arith.constant 0 : index
    %163 = vector.load %arg2[%162, %c0_49] : memref<64x32xf32, #tpu.memory_space<vmem>>, vector<1x32xf32>
    %164 = arith.addf %158, %163 : vector<1x32xf32>
    %c2_i32_50 = arith.constant 2 : i32
    %165 = arith.addi %151, %c2_i32_50 : i32
    %166 = arith.index_cast %165 : i32 to index
    %167 = memref.load %arg1[%166] : memref<128xi32, #tpu.memory_space<smem>>
    %168 = arith.index_cast %167 : i32 to index
    %c0_51 = arith.constant 0 : index
    %169 = vector.load %arg2[%168, %c0_51] : memref<64x32xf32, #tpu.memory_space<vmem>>, vector<1x32xf32>
    %170 = arith.addf %164, %169 : vector<1x32xf32>
    %c3_i32_52 = arith.constant 3 : i32
    %171 = arith.addi %151, %c3_i32_52 : i32
    %172 = arith.index_cast %171 : i32 to index
    %173 = memref.load %arg1[%172] : memref<128xi32, #tpu.memory_space<smem>>
    %174 = arith.index_cast %173 : i32 to index
    %c0_53 = arith.constant 0 : index
    %175 = vector.load %arg2[%174, %c0_53] : memref<64x32xf32, #tpu.memory_space<vmem>>, vector<1x32xf32>
    %176 = arith.addf %170, %175 : vector<1x32xf32>
    %c4_i32_54 = arith.constant 4 : i32
    %177 = arith.addi %151, %c4_i32_54 : i32
    %178 = arith.index_cast %177 : i32 to index
    %179 = memref.load %arg1[%178] : memref<128xi32, #tpu.memory_space<smem>>
    %180 = arith.index_cast %179 : i32 to index
    %c0_55 = arith.constant 0 : index
    %181 = vector.load %arg2[%180, %c0_55] : memref<64x32xf32, #tpu.memory_space<vmem>>, vector<1x32xf32>
    %182 = arith.addf %176, %181 : vector<1x32xf32>
    %c5_i32_56 = arith.constant 5 : i32
    %183 = arith.addi %151, %c5_i32_56 : i32
    %184 = arith.index_cast %183 : i32 to index
    %185 = memref.load %arg1[%184] : memref<128xi32, #tpu.memory_space<smem>>
    %186 = arith.index_cast %185 : i32 to index
    %c0_57 = arith.constant 0 : index
    %187 = vector.load %arg2[%186, %c0_57] : memref<64x32xf32, #tpu.memory_space<vmem>>, vector<1x32xf32>
    %188 = arith.addf %182, %187 : vector<1x32xf32>
    %c6_i32_58 = arith.constant 6 : i32
    %189 = arith.addi %151, %c6_i32_58 : i32
    %190 = arith.index_cast %189 : i32 to index
    %191 = memref.load %arg1[%190] : memref<128xi32, #tpu.memory_space<smem>>
    %192 = arith.index_cast %191 : i32 to index
    %c0_59 = arith.constant 0 : index
    %193 = vector.load %arg2[%192, %c0_59] : memref<64x32xf32, #tpu.memory_space<vmem>>, vector<1x32xf32>
    %194 = arith.addf %188, %193 : vector<1x32xf32>
    %c7_i32_60 = arith.constant 7 : i32
    %195 = arith.addi %151, %c7_i32_60 : i32
    %196 = arith.index_cast %195 : i32 to index
    %197 = memref.load %arg1[%196] : memref<128xi32, #tpu.memory_space<smem>>
    %198 = arith.index_cast %197 : i32 to index
    %c0_61 = arith.constant 0 : index
    %199 = vector.load %arg2[%198, %c0_61] : memref<64x32xf32, #tpu.memory_space<vmem>>, vector<1x32xf32>
    %200 = arith.addf %194, %199 : vector<1x32xf32>
    %c8_i32_62 = arith.constant 8 : i32
    %c32_i32 = arith.constant 32 : i32
    %201 = arith.addi %0, %c32_i32 : i32
    %cst_63 = arith.constant 0.000000e+00 : f32
    %202 = vector.broadcast %cst_63 : f32 to vector<1x32xf32>
    %c0_i32_64 = arith.constant 0 : i32
    %203 = arith.addi %201, %c0_i32_64 : i32
    %204 = arith.index_cast %203 : i32 to index
    %205 = memref.load %arg1[%204] : memref<128xi32, #tpu.memory_space<smem>>
    %206 = arith.index_cast %205 : i32 to index
    %c0_65 = arith.constant 0 : index
    %207 = vector.load %arg2[%206, %c0_65] : memref<64x32xf32, #tpu.memory_space<vmem>>, vector<1x32xf32>
    %208 = arith.addf %202, %207 : vector<1x32xf32>
    %c1_i32_66 = arith.constant 1 : i32
    %209 = arith.addi %201, %c1_i32_66 : i32
    %210 = arith.index_cast %209 : i32 to index
    %211 = memref.load %arg1[%210] : memref<128xi32, #tpu.memory_space<smem>>
    %212 = arith.index_cast %211 : i32 to index
    %c0_67 = arith.constant 0 : index
    %213 = vector.load %arg2[%212, %c0_67] : memref<64x32xf32, #tpu.memory_space<vmem>>, vector<1x32xf32>
    %214 = arith.addf %208, %213 : vector<1x32xf32>
    %c2_i32_68 = arith.constant 2 : i32
    %215 = arith.addi %201, %c2_i32_68 : i32
    %216 = arith.index_cast %215 : i32 to index
    %217 = memref.load %arg1[%216] : memref<128xi32, #tpu.memory_space<smem>>
    %218 = arith.index_cast %217 : i32 to index
    %c0_69 = arith.constant 0 : index
    %219 = vector.load %arg2[%218, %c0_69] : memref<64x32xf32, #tpu.memory_space<vmem>>, vector<1x32xf32>
    %220 = arith.addf %214, %219 : vector<1x32xf32>
    %c3_i32_70 = arith.constant 3 : i32
    %221 = arith.addi %201, %c3_i32_70 : i32
    %222 = arith.index_cast %221 : i32 to index
    %223 = memref.load %arg1[%222] : memref<128xi32, #tpu.memory_space<smem>>
    %224 = arith.index_cast %223 : i32 to index
    %c0_71 = arith.constant 0 : index
    %225 = vector.load %arg2[%224, %c0_71] : memref<64x32xf32, #tpu.memory_space<vmem>>, vector<1x32xf32>
    %226 = arith.addf %220, %225 : vector<1x32xf32>
    %c4_i32_72 = arith.constant 4 : i32
    %227 = arith.addi %201, %c4_i32_72 : i32
    %228 = arith.index_cast %227 : i32 to index
    %229 = memref.load %arg1[%228] : memref<128xi32, #tpu.memory_space<smem>>
    %230 = arith.index_cast %229 : i32 to index
    %c0_73 = arith.constant 0 : index
    %231 = vector.load %arg2[%230, %c0_73] : memref<64x32xf32, #tpu.memory_space<vmem>>, vector<1x32xf32>
    %232 = arith.addf %226, %231 : vector<1x32xf32>
    %c5_i32_74 = arith.constant 5 : i32
    %233 = arith.addi %201, %c5_i32_74 : i32
    %234 = arith.index_cast %233 : i32 to index
    %235 = memref.load %arg1[%234] : memref<128xi32, #tpu.memory_space<smem>>
    %236 = arith.index_cast %235 : i32 to index
    %c0_75 = arith.constant 0 : index
    %237 = vector.load %arg2[%236, %c0_75] : memref<64x32xf32, #tpu.memory_space<vmem>>, vector<1x32xf32>
    %238 = arith.addf %232, %237 : vector<1x32xf32>
    %c6_i32_76 = arith.constant 6 : i32
    %239 = arith.addi %201, %c6_i32_76 : i32
    %240 = arith.index_cast %239 : i32 to index
    %241 = memref.load %arg1[%240] : memref<128xi32, #tpu.memory_space<smem>>
    %242 = arith.index_cast %241 : i32 to index
    %c0_77 = arith.constant 0 : index
    %243 = vector.load %arg2[%242, %c0_77] : memref<64x32xf32, #tpu.memory_space<vmem>>, vector<1x32xf32>
    %244 = arith.addf %238, %243 : vector<1x32xf32>
    %c7_i32_78 = arith.constant 7 : i32
    %245 = arith.addi %201, %c7_i32_78 : i32
    %246 = arith.index_cast %245 : i32 to index
    %247 = memref.load %arg1[%246] : memref<128xi32, #tpu.memory_space<smem>>
    %248 = arith.index_cast %247 : i32 to index
    %c0_79 = arith.constant 0 : index
    %249 = vector.load %arg2[%248, %c0_79] : memref<64x32xf32, #tpu.memory_space<vmem>>, vector<1x32xf32>
    %250 = arith.addf %244, %249 : vector<1x32xf32>
    %c8_i32_80 = arith.constant 8 : i32
    %c40_i32 = arith.constant 40 : i32
    %251 = arith.addi %0, %c40_i32 : i32
    %cst_81 = arith.constant 0.000000e+00 : f32
    %252 = vector.broadcast %cst_81 : f32 to vector<1x32xf32>
    %c0_i32_82 = arith.constant 0 : i32
    %253 = arith.addi %251, %c0_i32_82 : i32
    %254 = arith.index_cast %253 : i32 to index
    %255 = memref.load %arg1[%254] : memref<128xi32, #tpu.memory_space<smem>>
    %256 = arith.index_cast %255 : i32 to index
    %c0_83 = arith.constant 0 : index
    %257 = vector.load %arg2[%256, %c0_83] : memref<64x32xf32, #tpu.memory_space<vmem>>, vector<1x32xf32>
    %258 = arith.addf %252, %257 : vector<1x32xf32>
    %c1_i32_84 = arith.constant 1 : i32
    %259 = arith.addi %251, %c1_i32_84 : i32
    %260 = arith.index_cast %259 : i32 to index
    %261 = memref.load %arg1[%260] : memref<128xi32, #tpu.memory_space<smem>>
    %262 = arith.index_cast %261 : i32 to index
    %c0_85 = arith.constant 0 : index
    %263 = vector.load %arg2[%262, %c0_85] : memref<64x32xf32, #tpu.memory_space<vmem>>, vector<1x32xf32>
    %264 = arith.addf %258, %263 : vector<1x32xf32>
    %c2_i32_86 = arith.constant 2 : i32
    %265 = arith.addi %251, %c2_i32_86 : i32
    %266 = arith.index_cast %265 : i32 to index
    %267 = memref.load %arg1[%266] : memref<128xi32, #tpu.memory_space<smem>>
    %268 = arith.index_cast %267 : i32 to index
    %c0_87 = arith.constant 0 : index
    %269 = vector.load %arg2[%268, %c0_87] : memref<64x32xf32, #tpu.memory_space<vmem>>, vector<1x32xf32>
    %270 = arith.addf %264, %269 : vector<1x32xf32>
    %c3_i32_88 = arith.constant 3 : i32
    %271 = arith.addi %251, %c3_i32_88 : i32
    %272 = arith.index_cast %271 : i32 to index
    %273 = memref.load %arg1[%272] : memref<128xi32, #tpu.memory_space<smem>>
    %274 = arith.index_cast %273 : i32 to index
    %c0_89 = arith.constant 0 : index
    %275 = vector.load %arg2[%274, %c0_89] : memref<64x32xf32, #tpu.memory_space<vmem>>, vector<1x32xf32>
    %276 = arith.addf %270, %275 : vector<1x32xf32>
    %c4_i32_90 = arith.constant 4 : i32
    %277 = arith.addi %251, %c4_i32_90 : i32
    %278 = arith.index_cast %277 : i32 to index
    %279 = memref.load %arg1[%278] : memref<128xi32, #tpu.memory_space<smem>>
    %280 = arith.index_cast %279 : i32 to index
    %c0_91 = arith.constant 0 : index
    %281 = vector.load %arg2[%280, %c0_91] : memref<64x32xf32, #tpu.memory_space<vmem>>, vector<1x32xf32>
    %282 = arith.addf %276, %281 : vector<1x32xf32>
    %c5_i32_92 = arith.constant 5 : i32
    %283 = arith.addi %251, %c5_i32_92 : i32
    %284 = arith.index_cast %283 : i32 to index
    %285 = memref.load %arg1[%284] : memref<128xi32, #tpu.memory_space<smem>>
    %286 = arith.index_cast %285 : i32 to index
    %c0_93 = arith.constant 0 : index
    %287 = vector.load %arg2[%286, %c0_93] : memref<64x32xf32, #tpu.memory_space<vmem>>, vector<1x32xf32>
    %288 = arith.addf %282, %287 : vector<1x32xf32>
    %c6_i32_94 = arith.constant 6 : i32
    %289 = arith.addi %251, %c6_i32_94 : i32
    %290 = arith.index_cast %289 : i32 to index
    %291 = memref.load %arg1[%290] : memref<128xi32, #tpu.memory_space<smem>>
    %292 = arith.index_cast %291 : i32 to index
    %c0_95 = arith.constant 0 : index
    %293 = vector.load %arg2[%292, %c0_95] : memref<64x32xf32, #tpu.memory_space<vmem>>, vector<1x32xf32>
    %294 = arith.addf %288, %293 : vector<1x32xf32>
    %c7_i32_96 = arith.constant 7 : i32
    %295 = arith.addi %251, %c7_i32_96 : i32
    %296 = arith.index_cast %295 : i32 to index
    %297 = memref.load %arg1[%296] : memref<128xi32, #tpu.memory_space<smem>>
    %298 = arith.index_cast %297 : i32 to index
    %c0_97 = arith.constant 0 : index
    %299 = vector.load %arg2[%298, %c0_97] : memref<64x32xf32, #tpu.memory_space<vmem>>, vector<1x32xf32>
    %300 = arith.addf %294, %299 : vector<1x32xf32>
    %c8_i32_98 = arith.constant 8 : i32
    %c48_i32 = arith.constant 48 : i32
    %301 = arith.addi %0, %c48_i32 : i32
    %cst_99 = arith.constant 0.000000e+00 : f32
    %302 = vector.broadcast %cst_99 : f32 to vector<1x32xf32>
    %c0_i32_100 = arith.constant 0 : i32
    %303 = arith.addi %301, %c0_i32_100 : i32
    %304 = arith.index_cast %303 : i32 to index
    %305 = memref.load %arg1[%304] : memref<128xi32, #tpu.memory_space<smem>>
    %306 = arith.index_cast %305 : i32 to index
    %c0_101 = arith.constant 0 : index
    %307 = vector.load %arg2[%306, %c0_101] : memref<64x32xf32, #tpu.memory_space<vmem>>, vector<1x32xf32>
    %308 = arith.addf %302, %307 : vector<1x32xf32>
    %c1_i32_102 = arith.constant 1 : i32
    %309 = arith.addi %301, %c1_i32_102 : i32
    %310 = arith.index_cast %309 : i32 to index
    %311 = memref.load %arg1[%310] : memref<128xi32, #tpu.memory_space<smem>>
    %312 = arith.index_cast %311 : i32 to index
    %c0_103 = arith.constant 0 : index
    %313 = vector.load %arg2[%312, %c0_103] : memref<64x32xf32, #tpu.memory_space<vmem>>, vector<1x32xf32>
    %314 = arith.addf %308, %313 : vector<1x32xf32>
    %c2_i32_104 = arith.constant 2 : i32
    %315 = arith.addi %301, %c2_i32_104 : i32
    %316 = arith.index_cast %315 : i32 to index
    %317 = memref.load %arg1[%316] : memref<128xi32, #tpu.memory_space<smem>>
    %318 = arith.index_cast %317 : i32 to index
    %c0_105 = arith.constant 0 : index
    %319 = vector.load %arg2[%318, %c0_105] : memref<64x32xf32, #tpu.memory_space<vmem>>, vector<1x32xf32>
    %320 = arith.addf %314, %319 : vector<1x32xf32>
    %c3_i32_106 = arith.constant 3 : i32
    %321 = arith.addi %301, %c3_i32_106 : i32
    %322 = arith.index_cast %321 : i32 to index
    %323 = memref.load %arg1[%322] : memref<128xi32, #tpu.memory_space<smem>>
    %324 = arith.index_cast %323 : i32 to index
    %c0_107 = arith.constant 0 : index
    %325 = vector.load %arg2[%324, %c0_107] : memref<64x32xf32, #tpu.memory_space<vmem>>, vector<1x32xf32>
    %326 = arith.addf %320, %325 : vector<1x32xf32>
    %c4_i32_108 = arith.constant 4 : i32
    %327 = arith.addi %301, %c4_i32_108 : i32
    %328 = arith.index_cast %327 : i32 to index
    %329 = memref.load %arg1[%328] : memref<128xi32, #tpu.memory_space<smem>>
    %330 = arith.index_cast %329 : i32 to index
    %c0_109 = arith.constant 0 : index
    %331 = vector.load %arg2[%330, %c0_109] : memref<64x32xf32, #tpu.memory_space<vmem>>, vector<1x32xf32>
    %332 = arith.addf %326, %331 : vector<1x32xf32>
    %c5_i32_110 = arith.constant 5 : i32
    %333 = arith.addi %301, %c5_i32_110 : i32
    %334 = arith.index_cast %333 : i32 to index
    %335 = memref.load %arg1[%334] : memref<128xi32, #tpu.memory_space<smem>>
    %336 = arith.index_cast %335 : i32 to index
    %c0_111 = arith.constant 0 : index
    %337 = vector.load %arg2[%336, %c0_111] : memref<64x32xf32, #tpu.memory_space<vmem>>, vector<1x32xf32>
    %338 = arith.addf %332, %337 : vector<1x32xf32>
    %c6_i32_112 = arith.constant 6 : i32
    %339 = arith.addi %301, %c6_i32_112 : i32
    %340 = arith.index_cast %339 : i32 to index
    %341 = memref.load %arg1[%340] : memref<128xi32, #tpu.memory_space<smem>>
    %342 = arith.index_cast %341 : i32 to index
    %c0_113 = arith.constant 0 : index
    %343 = vector.load %arg2[%342, %c0_113] : memref<64x32xf32, #tpu.memory_space<vmem>>, vector<1x32xf32>
    %344 = arith.addf %338, %343 : vector<1x32xf32>
    %c7_i32_114 = arith.constant 7 : i32
    %345 = arith.addi %301, %c7_i32_114 : i32
    %346 = arith.index_cast %345 : i32 to index
    %347 = memref.load %arg1[%346] : memref<128xi32, #tpu.memory_space<smem>>
    %348 = arith.index_cast %347 : i32 to index
    %c0_115 = arith.constant 0 : index
    %349 = vector.load %arg2[%348, %c0_115] : memref<64x32xf32, #tpu.memory_space<vmem>>, vector<1x32xf32>
    %350 = arith.addf %344, %349 : vector<1x32xf32>
    %c8_i32_116 = arith.constant 8 : i32
    %c56_i32 = arith.constant 56 : i32
    %351 = arith.addi %0, %c56_i32 : i32
    %cst_117 = arith.constant 0.000000e+00 : f32
    %352 = vector.broadcast %cst_117 : f32 to vector<1x32xf32>
    %c0_i32_118 = arith.constant 0 : i32
    %353 = arith.addi %351, %c0_i32_118 : i32
    %354 = arith.index_cast %353 : i32 to index
    %355 = memref.load %arg1[%354] : memref<128xi32, #tpu.memory_space<smem>>
    %356 = arith.index_cast %355 : i32 to index
    %c0_119 = arith.constant 0 : index
    %357 = vector.load %arg2[%356, %c0_119] : memref<64x32xf32, #tpu.memory_space<vmem>>, vector<1x32xf32>
    %358 = arith.addf %352, %357 : vector<1x32xf32>
    %c1_i32_120 = arith.constant 1 : i32
    %359 = arith.addi %351, %c1_i32_120 : i32
    %360 = arith.index_cast %359 : i32 to index
    %361 = memref.load %arg1[%360] : memref<128xi32, #tpu.memory_space<smem>>
    %362 = arith.index_cast %361 : i32 to index
    %c0_121 = arith.constant 0 : index
    %363 = vector.load %arg2[%362, %c0_121] : memref<64x32xf32, #tpu.memory_space<vmem>>, vector<1x32xf32>
    %364 = arith.addf %358, %363 : vector<1x32xf32>
    %c2_i32_122 = arith.constant 2 : i32
    %365 = arith.addi %351, %c2_i32_122 : i32
    %366 = arith.index_cast %365 : i32 to index
    %367 = memref.load %arg1[%366] : memref<128xi32, #tpu.memory_space<smem>>
    %368 = arith.index_cast %367 : i32 to index
    %c0_123 = arith.constant 0 : index
    %369 = vector.load %arg2[%368, %c0_123] : memref<64x32xf32, #tpu.memory_space<vmem>>, vector<1x32xf32>
    %370 = arith.addf %364, %369 : vector<1x32xf32>
    %c3_i32_124 = arith.constant 3 : i32
    %371 = arith.addi %351, %c3_i32_124 : i32
    %372 = arith.index_cast %371 : i32 to index
    %373 = memref.load %arg1[%372] : memref<128xi32, #tpu.memory_space<smem>>
    %374 = arith.index_cast %373 : i32 to index
    %c0_125 = arith.constant 0 : index
    %375 = vector.load %arg2[%374, %c0_125] : memref<64x32xf32, #tpu.memory_space<vmem>>, vector<1x32xf32>
    %376 = arith.addf %370, %375 : vector<1x32xf32>
    %c4_i32_126 = arith.constant 4 : i32
    %377 = arith.addi %351, %c4_i32_126 : i32
    %378 = arith.index_cast %377 : i32 to index
    %379 = memref.load %arg1[%378] : memref<128xi32, #tpu.memory_space<smem>>
    %380 = arith.index_cast %379 : i32 to index
    %c0_127 = arith.constant 0 : index
    %381 = vector.load %arg2[%380, %c0_127] : memref<64x32xf32, #tpu.memory_space<vmem>>, vector<1x32xf32>
    %382 = arith.addf %376, %381 : vector<1x32xf32>
    %c5_i32_128 = arith.constant 5 : i32
    %383 = arith.addi %351, %c5_i32_128 : i32
    %384 = arith.index_cast %383 : i32 to index
    %385 = memref.load %arg1[%384] : memref<128xi32, #tpu.memory_space<smem>>
    %386 = arith.index_cast %385 : i32 to index
    %c0_129 = arith.constant 0 : index
    %387 = vector.load %arg2[%386, %c0_129] : memref<64x32xf32, #tpu.memory_space<vmem>>, vector<1x32xf32>
    %388 = arith.addf %382, %387 : vector<1x32xf32>
    %c6_i32_130 = arith.constant 6 : i32
    %389 = arith.addi %351, %c6_i32_130 : i32
    %390 = arith.index_cast %389 : i32 to index
    %391 = memref.load %arg1[%390] : memref<128xi32, #tpu.memory_space<smem>>
    %392 = arith.index_cast %391 : i32 to index
    %c0_131 = arith.constant 0 : index
    %393 = vector.load %arg2[%392, %c0_131] : memref<64x32xf32, #tpu.memory_space<vmem>>, vector<1x32xf32>
    %394 = arith.addf %388, %393 : vector<1x32xf32>
    %c7_i32_132 = arith.constant 7 : i32
    %395 = arith.addi %351, %c7_i32_132 : i32
    %396 = arith.index_cast %395 : i32 to index
    %397 = memref.load %arg1[%396] : memref<128xi32, #tpu.memory_space<smem>>
    %398 = arith.index_cast %397 : i32 to index
    %c0_133 = arith.constant 0 : index
    %399 = vector.load %arg2[%398, %c0_133] : memref<64x32xf32, #tpu.memory_space<vmem>>, vector<1x32xf32>
    %400 = arith.addf %394, %399 : vector<1x32xf32>
    %c8_i32_134 = arith.constant 8 : i32
    %401 = tpu.concatenate %50, %100, %150, %200, %250, %300, %350, %400 in 0 : vector<1x32xf32>, vector<1x32xf32>, vector<1x32xf32>, vector<1x32xf32>, vector<1x32xf32>, vector<1x32xf32>, vector<1x32xf32>, vector<1x32xf32> -> vector<8x32xf32>
    %cst_135 = arith.constant 1.250000e-01 : f32
    %402 = vector.broadcast %cst_135 : f32 to vector<8x32xf32>
    %403 = arith.mulf %401, %402 : vector<8x32xf32>
    %404 = arith.truncf %403 : vector<8x32xf32> to vector<8x32xbf16>
    %c0_136 = arith.constant 0 : index
    %c0_137 = arith.constant 0 : index
    %405 = vector.load %arg3[%c0_136, %c0_137] : memref<32x8xbf16, #tpu.memory_space<vmem>>, vector<32x8xbf16>
    %cst_138 = arith.constant dense<0.000000e+00> : vector<8x8xf32>
    %406 = tpu.matmul %404, %405, %cst_138 {dimension_numbers = #tpu.dot_dimension_numbers<[1], [0], [0], [1], [0, 0, 1, 1], [], []>} : vector<8x32xbf16>, vector<32x8xbf16>, vector<8x8xf32> -> vector<8x8xf32>
    %c0_139 = arith.constant 0 : index
    %c0_140 = arith.constant 0 : index
    %407 = vector.load %arg4[%c0_139, %c0_140] : memref<1x8xf32, #tpu.memory_space<vmem>>, vector<1x8xf32>
    %408 = vector.broadcast %407 : vector<1x8xf32> to vector<8x8xf32>
    %409 = arith.addf %406, %408 : vector<8x8xf32>
    %c0_141 = arith.constant 0 : index
    %c0_142 = arith.constant 0 : index
    %410 = vector.load %arg5[%c0_141, %c0_142] : memref<8x8xf32, #tpu.memory_space<vmem>>, vector<8x8xf32>
    tpu.vector_store %arg5[%c0_141, %c0_142], %409 {strides = array<i32>} : memref<8x8xf32, #tpu.memory_space<vmem>>, vector<8x8xf32>,
    return
  }
  func.func @transform_0(%arg0: i32, %arg1: memref<128xi32, #tpu.memory_space<smem>>) -> (i32, i32) {
    %c0_i32 = arith.constant 0 : i32
    %c0_i32_0 = arith.constant 0 : i32
    %c0_i32_1 = arith.constant 0 : i32
    return %c0_i32, %c0_i32_0 : i32, i32
  }
  func.func @transform_1(%arg0: i32, %arg1: memref<128xi32, #tpu.memory_space<smem>>) -> (i32, i32) {
    %c0_i32 = arith.constant 0 : i32
    %c0_i32_0 = arith.constant 0 : i32
    %c0_i32_1 = arith.constant 0 : i32
    return %c0_i32, %c0_i32_0 : i32, i32
  }
  func.func @transform_2(%arg0: i32, %arg1: memref<128xi32, #tpu.memory_space<smem>>) -> (i32, i32) {
    %c0_i32 = arith.constant 0 : i32
    %c0_i32_0 = arith.constant 0 : i32
    %c0_i32_1 = arith.constant 0 : i32
    return %c0_i32, %c0_i32_0 : i32, i32
  }
  func.func @transform_3(%arg0: i32, %arg1: memref<128xi32, #tpu.memory_space<smem>>) -> (i32, i32) {
    %c0_i32 = arith.constant 0 : i32
    %c0_i32_0 = arith.constant 0 : i32
    return %arg0, %c0_i32 : i32, i32
  }
}

</mosaic_0001>

<llo_original>
// kernel: tpu_custom_call.1
$region0: #{tpu_custom_call.1}
  #allocation0 [shape = 'u32[]', space=smem, size = 0x4, offset = 0x4, fixed_abs, tag = 'smem constant byte address 0x4 - core index']
  #allocation1 [shape = 'u32[144,128]{1,0:T(1,128)}', space=vmem, size = 0x12000, scoped, tag = 'internal scratch']
  #allocation2 [shape = 's32[1]{0}', space=sflag, size = 0x4, scoped, tag = 'scoped memory for tpu_custom_call.1']
  #allocation3 [shape = 'u8[512]{0}', space=smem, size = 0x200, scoped, tag = 'prefetched SMEM operand 0']
  %s0 = inlined_call_operand.vmem [shape: s32[128], index: 0, kind: input, shape index: {}]
  %s1 = inlined_call_operand.vmem [shape: f32[64,32], index: 1, kind: input, shape index: {}]
  %s2 = inlined_call_operand.vmem [shape: bf16[32,8], index: 2, kind: input, shape index: {}]
  %s3 = inlined_call_operand.vmem [shape: f32[1,8], index: 3, kind: input, shape index: {}]
  %s4 = inlined_call_operand.vmem [shape: f32[16,8], index: 4, kind: output, shape index: {}]
  %s5 = sld [smem:[#allocation0]]
  $region45: #{tpu_custom_call.1} parent=0
    _
  %s7 = ssub.s32 1, %s5
  %s8 = scalar_select 0, %s7, %s5
  %s9 = sshll.u32 %s0, 4
  %s10 = int_to_ptr.vmem [resolvable:$true] %s9
  %12 = dma.vmem_to_smem %s10, 16, [#allocation3], [#allocation2]
  %13 = dma.done [#allocation2], 16
  %14 = sfence
  loop: start=0, step=1, limit=4
  $region2: #{tpu_custom_call.1} parent=0 // loop_pre_header
    _
  $region3: #{tpu_custom_call.1} parent=0 // loop_header
    %s16 = sphi 0, %s20
    %p17 = scmp.ge.s32.totalorder %s16, 4
    %s24 = sphi 0, %s24
    %s26 = sphi 0, %s24
    %s27 = sphi 0, %s26
    %s41 = sphi 0, %s27
    %s45 = sphi 0, %s45
    %s47 = sphi 0, %s45
    %s48 = sphi 0, %s47
    %s62 = sphi 0, %s48
    %s66 = sphi 0, %s66
    %s68 = sphi 0, %s66
    %s69 = sphi 0, %s68
    %s83 = sphi 0, %s69
    %s89 = sphi 0, %s91
    %s92 = sphi 0, %s89
    %s93 = sphi 0, %s92
    %s109 = sphi 0, %s93
  $region4: #{tpu_custom_call.1} parent=0 // loop_header_branch
    %19 = sbr.rel (%p17) target = $region8
  $region5: #{tpu_custom_call.1} parent=0 // loop_body
    %s21 = ssub.s32 %s16, 1
    %s22 = ssub.s32 %s16, 2
    %s23 = sadd.s32 %s16, 1
    %s25 = sadd.s32 %s24, 1
    %p28 = scmp.eq.s32.totalorder %s16, 1
    %p29 = scmp.ne.s32.totalorder %s24, %s26
    %p30 = scmp.eq.s32.totalorder %s16, 0
    %p31 = por %p29, %p30
    %p32 = scmp.ne.s32.totalorder %s24, %s26
    %p33 = scmp.eq.s32.totalorder %s21, 1
    %p34 = por %p32, %p33
    %p35 = scmp.ne.s32.totalorder %s26, %s27
    %p36 = scmp.eq.s32.totalorder %s21, 0
    %p37 = por %p35, %p36
    %p38 = scmp.ne.s32.totalorder %s26, %s27
    %p39 = scmp.eq.s32.totalorder %s22, 1
    %p40 = por %p38, %p39
    %p42 = scmp.ne.s32.totalorder %s27, %s41
    %p43 = scmp.eq.s32.totalorder %s22, 0
    %p44 = por %p42, %p43
    %s46 = sadd.s32 %s45, 1
    %p49 = scmp.eq.s32.totalorder %s16, 1
    %p50 = scmp.ne.s32.totalorder %s45, %s47
    %p51 = scmp.eq.s32.totalorder %s16, 0
    %p52 = por %p50, %p51
    %p53 = scmp.ne.s32.totalorder %s45, %s47
    %p54 = scmp.eq.s32.totalorder %s21, 1
    %p55 = por %p53, %p54
    %p56 = scmp.ne.s32.totalorder %s47, %s48
    %p57 = scmp.eq.s32.totalorder %s21, 0
    %p58 = por %p56, %p57
    %p59 = scmp.ne.s32.totalorder %s47, %s48
    %p60 = scmp.eq.s32.totalorder %s22, 1
    %p61 = por %p59, %p60
    %p63 = scmp.ne.s32.totalorder %s48, %s62
    %p64 = scmp.eq.s32.totalorder %s22, 0
    %p65 = por %p63, %p64
    %s67 = sadd.s32 %s66, 1
    %p70 = scmp.eq.s32.totalorder %s16, 1
    %p71 = scmp.ne.s32.totalorder %s66, %s68
    %p72 = scmp.eq.s32.totalorder %s16, 0
    %p73 = por %p71, %p72
    %p74 = scmp.ne.s32.totalorder %s66, %s68
    %p75 = scmp.eq.s32.totalorder %s21, 1
    %p76 = por %p74, %p75
    %p77 = scmp.ne.s32.totalorder %s68, %s69
    %p78 = scmp.eq.s32.totalorder %s21, 0
    %p79 = por %p77, %p78
    %p80 = scmp.ne.s32.totalorder %s68, %s69
    %p81 = scmp.eq.s32.totalorder %s22, 1
    %p82 = por %p80, %p81
    %p84 = scmp.ne.s32.totalorder %s69, %s83
    %p85 = scmp.eq.s32.totalorder %s22, 0
    %p86 = por %p84, %p85
    %s87 = ssub.s32 %s16, %s23
    %p88 = scmp.eq.s32.totalorder %s87, 0
    %s90 = sadd.s32 %s89, 1
    %s91 = scalar_select %p88, %s89, %s90
    %p94 = pneg %p88
    %p95 = scmp.eq.s32.totalorder %s16, 1
    %p96 = por %p94, %p95
    %p97 = scmp.ne.s32.totalorder %s89, %s92
    %p98 = scmp.eq.s32.totalorder %s16, 0
    %p99 = por %p97, %p98
    %p100 = scmp.ne.s32.totalorder %s89, %s92
    %p101 = scmp.eq.s32.totalorder %s21, 1
    %p102 = por %p100, %p101
    %p103 = scmp.ne.s32.totalorder %s92, %s93
    %p104 = scmp.eq.s32.totalorder %s21, 0
    %p105 = por %p103, %p104
    %p106 = scmp.ne.s32.totalorder %s92, %s93
    %p107 = scmp.eq.s32.totalorder %s22, 1
    %p108 = por %p106, %p107
    %p110 = scmp.ne.s32.totalorder %s93, %s109
    %p111 = scmp.eq.s32.totalorder %s22, 0
    %p112 = por %p110, %p111
    %p113 = scmp.le.s32.totalorder 1, %s16
    %p114 = scmp.lt.s32.totalorder %s16, 3
    %p115 = pnand %p113, %p114
    %p116 = pneg %p115
    // Predicated region
    $region9: #{tpu_custom_call.1} parent=5 // pred_check
      _
    $region10: #{tpu_custom_call.1} parent=5 // pred_check_branch
      %118 = sbr.rel (%p115) target = $region12
    $region11: #{tpu_custom_call.1} parent=5 // pred_region
      %s119 = ssub.s32 %s16, 1
      // Predicated region
      $region13: #{tpu_custom_call.1} parent=11 // pred_check
        %p120 = pneg %p37
      $region14: #{tpu_custom_call.1} parent=11 // pred_check_branch
        %122 = sbr.rel (%p120) target = $region16
      $region15: #{tpu_custom_call.1} parent=11 // pred_region
        _
      $region16: #{tpu_custom_call.1} parent=11 // pred_fallthru
        _
      // Predicated region
      $region17: #{tpu_custom_call.1} parent=11 // pred_check
        %p123 = pneg %p58
      $region18: #{tpu_custom_call.1} parent=11 // pred_check_branch
        %125 = sbr.rel (%p123) target = $region20
      $region19: #{tpu_custom_call.1} parent=11 // pred_region
        _
      $region20: #{tpu_custom_call.1} parent=11 // pred_fallthru
        _
      // Predicated region
      $region21: #{tpu_custom_call.1} parent=11 // pred_check
        %p126 = pneg %p79
      $region22: #{tpu_custom_call.1} parent=11 // pred_check_branch
        %128 = sbr.rel (%p126) target = $region24
      $region23: #{tpu_custom_call.1} parent=11 // pred_region
        _
      $region24: #{tpu_custom_call.1} parent=11 // pred_fallthru
        _
    $region12: #{tpu_custom_call.1} parent=5 // pred_fallthru
      _
    %p129 = scmp.lt.s32.totalorder %s16, 2
    // Predicated region
    $region25: #{tpu_custom_call.1} parent=5 // pred_check
      %p130 = pneg %p129
    $region26: #{tpu_custom_call.1} parent=5 // pred_check_branch
      %132 = sbr.rel (%p130) target = $region28
    $region27: #{tpu_custom_call.1} parent=5 // pred_region
      _
    $region28: #{tpu_custom_call.1} parent=5 // pred_fallthru
      _
    %p133 = scmp.le.s32.totalorder 1, %s16
    %p134 = scmp.lt.s32.totalorder %s16, 3
    %p135 = pnand %p133, %p134
    %p136 = pneg %p135
    // Predicated region
    $region29: #{tpu_custom_call.1} parent=5 // pred_check
      _
    $region30: #{tpu_custom_call.1} parent=5 // pred_check_branch
      %138 = sbr.rel (%p135) target = $region32
    $region31: #{tpu_custom_call.1} parent=5 // pred_region
      %s139 = ssub.s32 %s16, 1
      %p140 = pneg %p37
      %p141 = pneg %p34
      %p142 = pneg %p58
      %p143 = pneg %p55
      %p144 = pneg %p79
      %p145 = pneg %p76
      %p146 = pneg %p105
      %p147 = pneg %p102
      %p148 = scmp.lt.s32.totalorder %s21, 1
      %s149 = scalar_select %p148, %s21, 1
      %s150 = smul.addr %s149, 8
      %s151 = scalar_lea.vmem %s4, %s150
      %p152 = scmp.lt.s32.totalorder %s21, 1
      %s153 = scalar_select %p152, %s21, 1
      %s154 = smul.addr %s153, 8
      %s155 = scalar_lea.vmem %s4, %s154
      %s157 = smul.u32 %s21, 64
      %s158 = sld [smem:[#allocation3 + %s157]]
      %s159 = scalar_lea.vmem %s1, %s158
      %v160 = vld [vmem:[%s159] sm:$0x1]
      %v161 = vadd.f32 %v160, 0.0
      %s162 = sadd.s32 %s157, 1
      %s163 = sld [smem:[#allocation3 + %s162]]
      %s164 = scalar_lea.vmem %s1, %s163
      %v165 = vld [vmem:[%s164] sm:$0x1]
      %v166 = vadd.f32 %v161, %v165
      %s167 = sadd.s32 %s157, 2
      %s168 = sld [smem:[#allocation3 + %s167]]
      %s169 = scalar_lea.vmem %s1, %s168
      %v170 = vld [vmem:[%s169] sm:$0x1]
      %v171 = vadd.f32 %v166, %v170
      %s172 = sadd.s32 %s157, 3
      %s173 = sld [smem:[#allocation3 + %s172]]
      %s174 = scalar_lea.vmem %s1, %s173
      %v175 = vld [vmem:[%s174] sm:$0x1]
      %v176 = vadd.f32 %v171, %v175
      %s177 = sadd.s32 %s157, 4
      %s178 = sld [smem:[#allocation3 + %s177]]
      %s179 = scalar_lea.vmem %s1, %s178
      %v180 = vld [vmem:[%s179] sm:$0x1]
      %v181 = vadd.f32 %v176, %v180
      %s182 = sadd.s32 %s157, 5
      %s183 = sld [smem:[#allocation3 + %s182]]
      %s184 = scalar_lea.vmem %s1, %s183
      %v185 = vld [vmem:[%s184] sm:$0x1]
      %v186 = vadd.f32 %v181, %v185
      %s187 = sadd.s32 %s157, 6
      %s188 = sld [smem:[#allocation3 + %s187]]
      %s189 = scalar_lea.vmem %s1, %s188
      %v190 = vld [vmem:[%s189] sm:$0x1]
      %v191 = vadd.f32 %v186, %v190
      %s192 = sadd.s32 %s157, 7
      %s193 = sld [smem:[#allocation3 + %s192]]
      %s194 = scalar_lea.vmem %s1, %s193
      %v195 = vld [vmem:[%s194] sm:$0x1]
      %v196 = vadd.f32 %v191, %v195
      %s197 = sadd.s32 %s157, 8
      %s198 = sld [smem:[#allocation3 + %s197]]
      %s199 = scalar_lea.vmem %s1, %s198
      %v200 = vld [vmem:[%s199] sm:$0x1]
      %v201 = vadd.f32 %v200, 0.0
      %s202 = sadd.s32 %s157, 9
      %s203 = sld [smem:[#allocation3 + %s202]]
      %s204 = scalar_lea.vmem %s1, %s203
      %v205 = vld [vmem:[%s204] sm:$0x1]
      %v206 = vadd.f32 %v201, %v205
      %s207 = sadd.s32 %s157, 10
      %s208 = sld [smem:[#allocation3 + %s207]]
      %s209 = scalar_lea.vmem %s1, %s208
      %v210 = vld [vmem:[%s209] sm:$0x1]
      %v211 = vadd.f32 %v206, %v210
      %s212 = sadd.s32 %s157, 11
      %s213 = sld [smem:[#allocation3 + %s212]]
      %s214 = scalar_lea.vmem %s1, %s213
      %v215 = vld [vmem:[%s214] sm:$0x1]
      %v216 = vadd.f32 %v211, %v215
      %s217 = sadd.s32 %s157, 12
      %s218 = sld [smem:[#allocation3 + %s217]]
      %s219 = scalar_lea.vmem %s1, %s218
      %v220 = vld [vmem:[%s219] sm:$0x1]
      %v221 = vadd.f32 %v216, %v220
      %s222 = sadd.s32 %s157, 13
      %s223 = sld [smem:[#allocation3 + %s222]]
      %s224 = scalar_lea.vmem %s1, %s223
      %v225 = vld [vmem:[%s224] sm:$0x1]
      %v226 = vadd.f32 %v221, %v225
      %s227 = sadd.s32 %s157, 14
      %s228 = sld [smem:[#allocation3 + %s227]]
      %s229 = scalar_lea.vmem %s1, %s228
      %v230 = vld [vmem:[%s229] sm:$0x1]
      %v231 = vadd.f32 %v226, %v230
      %s232 = sadd.s32 %s157, 15
      %s233 = sld [smem:[#allocation3 + %s232]]
      %s234 = scalar_lea.vmem %s1, %s233
      %v235 = vld [vmem:[%s234] sm:$0x1]
      %v236 = vadd.f32 %v231, %v235
      %s237 = sadd.s32 %s157, 16
      %s238 = sld [smem:[#allocation3 + %s237]]
      %s239 = scalar_lea.vmem %s1, %s238
      %v240 = vld [vmem:[%s239] sm:$0x1]
      %v241 = vadd.f32 %v240, 0.0
      %s242 = sadd.s32 %s157, 17
      %s243 = sld [smem:[#allocation3 + %s242]]
      %s244 = scalar_lea.vmem %s1, %s243
      %v245 = vld [vmem:[%s244] sm:$0x1]
      %v246 = vadd.f32 %v241, %v245
      %s247 = sadd.s32 %s157, 18
      %s248 = sld [smem:[#allocation3 + %s247]]
      %s249 = scalar_lea.vmem %s1, %s248
      %v250 = vld [vmem:[%s249] sm:$0x1]
      %v251 = vadd.f32 %v246, %v250
      %s252 = sadd.s32 %s157, 19
      %s253 = sld [smem:[#allocation3 + %s252]]
      %s254 = scalar_lea.vmem %s1, %s253
      %v255 = vld [vmem:[%s254] sm:$0x1]
      %v256 = vadd.f32 %v251, %v255
      %s257 = sadd.s32 %s157, 20
      %s258 = sld [smem:[#allocation3 + %s257]]
      %s259 = scalar_lea.vmem %s1, %s258
      %v260 = vld [vmem:[%s259] sm:$0x1]
      %v261 = vadd.f32 %v256, %v260
      %s262 = sadd.s32 %s157, 21
      %s263 = sld [smem:[#allocation3 + %s262]]
      %s264 = scalar_lea.vmem %s1, %s263
      %v265 = vld [vmem:[%s264] sm:$0x1]
      %v266 = vadd.f32 %v261, %v265
      %s267 = sadd.s32 %s157, 22
      %s268 = sld [smem:[#allocation3 + %s267]]
      %s269 = scalar_lea.vmem %s1, %s268
      %v270 = vld [vmem:[%s269] sm:$0x1]
      %v271 = vadd.f32 %v266, %v270
      %s272 = sadd.s32 %s157, 23
      %s273 = sld [smem:[#allocation3 + %s272]]
      %s274 = scalar_lea.vmem %s1, %s273
      %v275 = vld [vmem:[%s274] sm:$0x1]
      %v276 = vadd.f32 %v271, %v275
      %s277 = sadd.s32 %s157, 24
      %s278 = sld [smem:[#allocation3 + %s277]]
      %s279 = scalar_lea.vmem %s1, %s278
      %v280 = vld [vmem:[%s279] sm:$0x1]
      %v281 = vadd.f32 %v280, 0.0
      %s282 = sadd.s32 %s157, 25
      %s283 = sld [smem:[#allocation3 + %s282]]
      %s284 = scalar_lea.vmem %s1, %s283
      %v285 = vld [vmem:[%s284] sm:$0x1]
      %v286 = vadd.f32 %v281, %v285
      %s287 = sadd.s32 %s157, 26
      %s288 = sld [smem:[#allocation3 + %s287]]
      %s289 = scalar_lea.vmem %s1, %s288
      %v290 = vld [vmem:[%s289] sm:$0x1]
      %v291 = vadd.f32 %v286, %v290
      %s292 = sadd.s32 %s157, 27
      %s293 = sld [smem:[#allocation3 + %s292]]
      %s294 = scalar_lea.vmem %s1, %s293
      %v295 = vld [vmem:[%s294] sm:$0x1]
      %v296 = vadd.f32 %v291, %v295
      %s297 = sadd.s32 %s157, 28
      %s298 = sld [smem:[#allocation3 + %s297]]
      %s299 = scalar_lea.vmem %s1, %s298
      %v300 = vld [vmem:[%s299] sm:$0x1]
      %v301 = vadd.f32 %v296, %v300
      %s302 = sadd.s32 %s157, 29
      %s303 = sld [smem:[#allocation3 + %s302]]
      %s304 = scalar_lea.vmem %s1, %s303
      %v305 = vld [vmem:[%s304] sm:$0x1]
      %v306 = vadd.f32 %v301, %v305
      %s307 = sadd.s32 %s157, 30
      %s308 = sld [smem:[#allocation3 + %s307]]
      %s309 = scalar_lea.vmem %s1, %s308
      %v310 = vld [vmem:[%s309] sm:$0x1]
      %v311 = vadd.f32 %v306, %v310
      %s312 = sadd.s32 %s157, 31
      %s313 = sld [smem:[#allocation3 + %s312]]
      %s314 = scalar_lea.vmem %s1, %s313
      %v315 = vld [vmem:[%s314] sm:$0x1]
      %v316 = vadd.f32 %v311, %v315
      %s317 = sadd.s32 %s157, 32
      %s318 = sld [smem:[#allocation3 + %s317]]
      %s319 = scalar_lea.vmem %s1, %s318
      %v320 = vld [vmem:[%s319] sm:$0x1]
      %v321 = vadd.f32 %v320, 0.0
      %s322 = sadd.s32 %s157, 33
      %s323 = sld [smem:[#allocation3 + %s322]]
      %s324 = scalar_lea.vmem %s1, %s323
      %v325 = vld [vmem:[%s324] sm:$0x1]
      %v326 = vadd.f32 %v321, %v325
      %s327 = sadd.s32 %s157, 34
      %s328 = sld [smem:[#allocation3 + %s327]]
      %s329 = scalar_lea.vmem %s1, %s328
      %v330 = vld [vmem:[%s329] sm:$0x1]
      %v331 = vadd.f32 %v326, %v330
      %s332 = sadd.s32 %s157, 35
      %s333 = sld [smem:[#allocation3 + %s332]]
      %s334 = scalar_lea.vmem %s1, %s333
      %v335 = vld [vmem:[%s334] sm:$0x1]
      %v336 = vadd.f32 %v331, %v335
      %s337 = sadd.s32 %s157, 36
      %s338 = sld [smem:[#allocation3 + %s337]]
      %s339 = scalar_lea.vmem %s1, %s338
      %v340 = vld [vmem:[%s339] sm:$0x1]
      %v341 = vadd.f32 %v336, %v340
      %s342 = sadd.s32 %s157, 37
      %s343 = sld [smem:[#allocation3 + %s342]]
      %s344 = scalar_lea.vmem %s1, %s343
      %v345 = vld [vmem:[%s344] sm:$0x1]
      %v346 = vadd.f32 %v341, %v345
      %s347 = sadd.s32 %s157, 38
      %s348 = sld [smem:[#allocation3 + %s347]]
      %s349 = scalar_lea.vmem %s1, %s348
      %v350 = vld [vmem:[%s349] sm:$0x1]
      %v351 = vadd.f32 %v346, %v350
      %s352 = sadd.s32 %s157, 39
      %s353 = sld [smem:[#allocation3 + %s352]]
      %s354 = scalar_lea.vmem %s1, %s353
      %v355 = vld [vmem:[%s354] sm:$0x1]
      %v356 = vadd.f32 %v351, %v355
      %s357 = sadd.s32 %s157, 40
      %s358 = sld [smem:[#allocation3 + %s357]]
      %s359 = scalar_lea.vmem %s1, %s358
      %v360 = vld [vmem:[%s359] sm:$0x1]
      %v361 = vadd.f32 %v360, 0.0
      %s362 = sadd.s32 %s157, 41
      %s363 = sld [smem:[#allocation3 + %s362]]
      %s364 = scalar_lea.vmem %s1, %s363
      %v365 = vld [vmem:[%s364] sm:$0x1]
      %v366 = vadd.f32 %v361, %v365
      %s367 = sadd.s32 %s157, 42
      %s368 = sld [smem:[#allocation3 + %s367]]
      %s369 = scalar_lea.vmem %s1, %s368
      %v370 = vld [vmem:[%s369] sm:$0x1]
      %v371 = vadd.f32 %v366, %v370
      %s372 = sadd.s32 %s157, 43
      %s373 = sld [smem:[#allocation3 + %s372]]
      %s374 = scalar_lea.vmem %s1, %s373
      %v375 = vld [vmem:[%s374] sm:$0x1]
      %v376 = vadd.f32 %v371, %v375
      %s377 = sadd.s32 %s157, 44
      %s378 = sld [smem:[#allocation3 + %s377]]
      %s379 = scalar_lea.vmem %s1, %s378
      %v380 = vld [vmem:[%s379] sm:$0x1]
      %v381 = vadd.f32 %v376, %v380
      %s382 = sadd.s32 %s157, 45
      %s383 = sld [smem:[#allocation3 + %s382]]
      %s384 = scalar_lea.vmem %s1, %s383
      %v385 = vld [vmem:[%s384] sm:$0x1]
      %v386 = vadd.f32 %v381, %v385
      %s387 = sadd.s32 %s157, 46
      %s388 = sld [smem:[#allocation3 + %s387]]
      %s389 = scalar_lea.vmem %s1, %s388
      %v390 = vld [vmem:[%s389] sm:$0x1]
      %v391 = vadd.f32 %v386, %v390
      %s392 = sadd.s32 %s157, 47
      %s393 = sld [smem:[#allocation3 + %s392]]
      %s394 = scalar_lea.vmem %s1, %s393
      %v395 = vld [vmem:[%s394] sm:$0x1]
      %v396 = vadd.f32 %v391, %v395
      %s397 = sadd.s32 %s157, 48
      %s398 = sld [smem:[#allocation3 + %s397]]
      %s399 = scalar_lea.vmem %s1, %s398
      %v400 = vld [vmem:[%s399] sm:$0x1]
      %v401 = vadd.f32 %v400, 0.0
      %s402 = sadd.s32 %s157, 49
      %s403 = sld [smem:[#allocation3 + %s402]]
      %s404 = scalar_lea.vmem %s1, %s403
      %v405 = vld [vmem:[%s404] sm:$0x1]
      %v406 = vadd.f32 %v401, %v405
      %s407 = sadd.s32 %s157, 50
      %s408 = sld [smem:[#allocation3 + %s407]]
      %s409 = scalar_lea.vmem %s1, %s408
      %v410 = vld [vmem:[%s409] sm:$0x1]
      %v411 = vadd.f32 %v406, %v410
      %s412 = sadd.s32 %s157, 51
      %s413 = sld [smem:[#allocation3 + %s412]]
      %s414 = scalar_lea.vmem %s1, %s413
      %v415 = vld [vmem:[%s414] sm:$0x1]
      %v416 = vadd.f32 %v411, %v415
      %s417 = sadd.s32 %s157, 52
      %s418 = sld [smem:[#allocation3 + %s417]]
      %s419 = scalar_lea.vmem %s1, %s418
      %v420 = vld [vmem:[%s419] sm:$0x1]
      %v421 = vadd.f32 %v416, %v420
      %s422 = sadd.s32 %s157, 53
      %s423 = sld [smem:[#allocation3 + %s422]]
      %s424 = scalar_lea.vmem %s1, %s423
      %v425 = vld [vmem:[%s424] sm:$0x1]
      %v426 = vadd.f32 %v421, %v425
      %s427 = sadd.s32 %s157, 54
      %s428 = sld [smem:[#allocation3 + %s427]]
      %s429 = scalar_lea.vmem %s1, %s428
      %v430 = vld [vmem:[%s429] sm:$0x1]
      %v431 = vadd.f32 %v426, %v430
      %s432 = sadd.s32 %s157, 55
      %s433 = sld [smem:[#allocation3 + %s432]]
      %s434 = scalar_lea.vmem %s1, %s433
      %v435 = vld [vmem:[%s434] sm:$0x1]
      %v436 = vadd.f32 %v431, %v435
      %s437 = sadd.s32 %s157, 56
      %s438 = sld [smem:[#allocation3 + %s437]]
      %s439 = scalar_lea.vmem %s1, %s438
      %v440 = vld [vmem:[%s439] sm:$0x1]
      %v441 = vadd.f32 %v440, 0.0
      %s442 = sadd.s32 %s157, 57
      %s443 = sld [smem:[#allocation3 + %s442]]
      %s444 = scalar_lea.vmem %s1, %s443
      %v445 = vld [vmem:[%s444] sm:$0x1]
      %v446 = vadd.f32 %v441, %v445
      %s447 = sadd.s32 %s157, 58
      %s448 = sld [smem:[#allocation3 + %s447]]
      %s449 = scalar_lea.vmem %s1, %s448
      %v450 = vld [vmem:[%s449] sm:$0x1]
      %v451 = vadd.f32 %v446, %v450
      %s452 = sadd.s32 %s157, 59
      %s453 = sld [smem:[#allocation3 + %s452]]
      %s454 = scalar_lea.vmem %s1, %s453
      %v455 = vld [vmem:[%s454] sm:$0x1]
      %v456 = vadd.f32 %v451, %v455
      %s457 = sadd.s32 %s157, 60
      %s458 = sld [smem:[#allocation3 + %s457]]
      %s459 = scalar_lea.vmem %s1, %s458
      %v460 = vld [vmem:[%s459] sm:$0x1]
      %v461 = vadd.f32 %v456, %v460
      %s462 = sadd.s32 %s157, 61
      %s463 = sld [smem:[#allocation3 + %s462]]
      %s464 = scalar_lea.vmem %s1, %s463
      %v465 = vld [vmem:[%s464] sm:$0x1]
      %v466 = vadd.f32 %v461, %v465
      %s467 = sadd.s32 %s157, 62
      %s468 = sld [smem:[#allocation3 + %s467]]
      %s469 = scalar_lea.vmem %s1, %s468
      %v470 = vld [vmem:[%s469] sm:$0x1]
      %v471 = vadd.f32 %v466, %v470
      %s472 = sadd.s32 %s157, 63
      %s473 = sld [smem:[#allocation3 + %s472]]
      %s474 = scalar_lea.vmem %s1, %s473
      %v475 = vld [vmem:[%s474] sm:$0x1]
      %v476 = vadd.f32 %v471, %v475
      %v478 = vrot.slane %v236, 7
      %v481 = vrot.slane %v276, 6
      %v484 = vrot.slane %v316, 5
      %v487 = vrot.slane %v356, 4
      %v490 = vrot.slane %v396, 3
      %v493 = vrot.slane %v436, 2
      %v496 = vrot.slane %v476, 1
      %vm498 = vcmask 1040384
      %v499 = vsel %vm498, %v196, %v478
      %vm500 = vcmask 1041408
      %v501 = vsel %vm500, %v499, %v481
      %vm502 = vcmask 1042432
      %v503 = vsel %vm502, %v501, %v484
      %vm504 = vcmask 1043456
      %v505 = vsel %vm504, %v503, %v487
      %vm506 = vcmask 1044480
      %v507 = vsel %vm506, %v505, %v490
      %vm508 = vcmask 1045504
      %v509 = vsel %vm508, %v507, %v493
      %vm510 = vcmask 1046528
      %v511 = vsel %vm510, %v509, %v496
      %v512 = vmul.f32 %v511, 0.125
      %v513 = vpack.c.bf16 %v512, %v512
      %v514 = vld [vmem:[%s2] sm:$0xf]
      %v515 = vld [vmem:[%s2 + $0x4] sm:$0xf]
      %v516 = vld [vmem:[%s2 + $0x8] sm:$0xf]
      %v517 = vld [vmem:[%s2 + $0xc] sm:$0xf]
      %v518 = vld [vmem:[%s3] sm:$0x1]
      %v520 = vlaneseq
      %v521 = vshrl.u32 %v520, 7
      %v522 = vsub.s32 0, %v521
      %v523 = vrot.slane %v518, %v522
      %v529 = vunpack.c.l.b16 %v514
      %v530 = vunpack.c.l.b16 %v515
      %v531 = vunpack.c.l.b16 %v516
      %v532 = vunpack.c.l.b16 %v517
      %v533 = vpack.c.b16 %v530, %v529
      %v534 = vpack.c.b16 %v532, %v531
      %vm537 = vcmask 261120
      %v539 = vsel %vm537, %v513, 0
      %541 = vmatprep.subr.bf16.mxu0 0
      %542 = vmatpush1.bf16.msra.mxu0 %v533
      %543 = vmatprep.subr.bf16.mxu0 0
      %544 = vmatpush1.bf16.msra.mxu0 %v534
      %545 = vmatprep.subr.bf16.mxu0 0
      %546 = vmatpush1.bf16.msra.mxu0 0
      %547 = vmatprep.subr.bf16.mxu0 0
      %548 = vmatpush1.bf16.msra.mxu0 0
      %549 = vmatprep.subr.bf16.mxu0 0
      %550 = vmatpush1.bf16.msra.mxu0 0
      %551 = vmatprep.subr.bf16.mxu0 0
      %552 = vmatpush1.bf16.msra.mxu0 0
      %553 = vmatprep.subr.bf16.mxu0 0
      %554 = vmatpush1.bf16.msra.mxu0 0
      %555 = vmatprep.subr.bf16.mxu0 0
      %556 = vmatpush1.bf16.msra.mxu0 0
      %557 = vmatprep.subr.bf16.mxu0 0
      %558 = vmatpush1.bf16.msra.mxu0 0
      %559 = vmatprep.subr.bf16.mxu0 0
      %560 = vmatpush1.bf16.msra.mxu0 0
      %561 = vmatprep.subr.bf16.mxu0 0
      %562 = vmatpush1.bf16.msra.mxu0 0
      %563 = vmatprep.subr.bf16.mxu0 0
      %564 = vmatpush1.bf16.msra.mxu0 0
      %565 = vmatprep.subr.bf16.mxu0 0
      %566 = vmatpush1.bf16.msra.mxu0 0
      %567 = vmatprep.subr.bf16.mxu0 0
      %568 = vmatpush1.bf16.msra.mxu0 0
      %569 = vmatprep.subr.bf16.mxu0 0
      %570 = vmatpush1.bf16.msra.mxu0 0
      %571 = vmatprep.subr.bf16.mxu0 0
      %572 = vmatpush1.bf16.msra.mxu0 0
      %573 = vmatprep.mubr.bf16.mxu0 0
      %574 = vmatmul.mubr.bf16.gmra.mrb[0].mxu0 %v539
      %v575 = vpop.f32.mrb[0].mxu0
      %v576 = vadd.f32 %v523, %v575
      %v577 = vpop.f32.mrb[0].mxu0
      %v578 = vpop.f32.mrb[0].mxu0
      %v579 = vpop.f32.mrb[0].mxu0
      %580 = vdwg.mxu0
      %vm581 = vcmask 64512
      %582 = vst.msk [vmem:[%s155] sm:$0xff] %vm581, %v576
      %p583 = scmp.lt.s32.totalorder %s21, 1
      %s584 = scalar_select %p583, %s21, 1
      %s585 = smul.addr %s584, 8
      %s586 = scalar_lea.vmem %s4, %s585
      // Predicated region
      $region33: #{tpu_custom_call.1} parent=31 // pred_check
        %p587 = pneg %p102
      $region34: #{tpu_custom_call.1} parent=31 // pred_check_branch
        %589 = sbr.rel (%p587) target = $region36
      $region35: #{tpu_custom_call.1} parent=31 // pred_region
        _
      $region36: #{tpu_custom_call.1} parent=31 // pred_fallthru
        _
    $region32: #{tpu_custom_call.1} parent=5 // pred_fallthru
      _
    %p590 = scmp.le.s32.totalorder 2, %s16
    // Predicated region
    $region37: #{tpu_custom_call.1} parent=5 // pred_check
      %p591 = pneg %p590
    $region38: #{tpu_custom_call.1} parent=5 // pred_check_branch
      %593 = sbr.rel (%p591) target = $region40
    $region39: #{tpu_custom_call.1} parent=5 // pred_region
      %s594 = ssub.s32 %s16, 2
      // Predicated region
      $region41: #{tpu_custom_call.1} parent=39 // pred_check
        %p595 = pneg %p108
      $region42: #{tpu_custom_call.1} parent=39 // pred_check_branch
        %597 = sbr.rel (%p595) target = $region44
      $region43: #{tpu_custom_call.1} parent=39 // pred_region
        %p598 = scmp.lt.s32.totalorder %s22, 1
        %s599 = scalar_select %p598, %s22, 1
        %s600 = smul.addr %s599, 8
        %s601 = scalar_lea.vmem %s4, %s600
      $region44: #{tpu_custom_call.1} parent=39 // pred_fallthru
        _
    $region40: #{tpu_custom_call.1} parent=5 // pred_fallthru
      _
  $region6: #{tpu_custom_call.1} parent=0 // loop_footer
    %s20 = sadd.s32 1, %s16
  $region7: #{tpu_custom_call.1} parent=0 // loop_footer_branch
    %15 = sbr.rel target = $region3
  $region8: #{tpu_custom_call.1} parent=0 // loop_exit
    _

</llo_original>
